<compile_context>
chip_gen: v7x
topology: tpu7x:2x2x1
jax: 0.10.0
libtpu: 0.0.40
codegen_flags: <defaults>
</compile_context>

<pallas_src>
import jax
import jax.numpy as jnp
from jax import lax
from jax.experimental import pallas as pl
from jax.experimental.pallas import tpu as pltpu


def _round_up(n, m):
    return (n + m - 1) // m * m


def _irm_kernel(x_ref, w1_ref, b1_ref, w2_ref, b2_ref, wpt_ref, bp_ref,
                y_ref, rep_ref):
    # x_ref: (trows, p*x_dim); weights are block-diagonal p-packed versions so
    # every matmul operand / result is lane-dense (last dim == p*h_dim).
    x = x_ref[...]
    h1 = jnp.dot(x, w1_ref[...], preferred_element_type=jnp.float32) + b1_ref[...]
    h1 = jnp.maximum(h1, 0.0)
    h2 = jnp.dot(h1, w2_ref[...], preferred_element_type=jnp.float32) + b2_ref[...]
    h2 = jnp.maximum(h2, 0.0)
    rep_ref[...] = h2.astype(rep_ref.dtype)              # lane-dense store

    # Prediction head, already transposed for a lane-dense y store:
    #   y_t[g, n] = sum_k wpt[g, k] * h2[n, k]   (A @ B^T pattern, K = p*h_dim,
    #   N = trows), i.e. the per-packed-group dot with wp.  Output last dim is
    #   trows (>= 128-multiple when tiled) -> unmasked vst.
    y_t = lax.dot_general(wpt_ref[...], h2, (((1,), (1,)), ((), ())),
                          preferred_element_type=jnp.float32)
    y_ref[...] = (y_t + bp_ref[...]).astype(y_ref.dtype)


def _choose_tile(rows, p, kx, kh, tb_max):
    """Pick the packed-row tile size (trows) for the 1-D batch grid."""
    QUANT = 128  # keeps tiled blocks (8,128)-aligned and the y block lane-dense
    if rows <= QUANT:
        return rows                                   # single block == full array dims
    # Per packed-row VMEM working set: 2x double-buffered x + 2x rep + h1 + h2 (f32).
    row_bytes = 4 * (2 * kx + 4 * kh)
    cap = max(QUANT, ((12 << 20) // row_bytes) // QUANT * QUANT)
    trows_max = max(QUANT, min((tb_max // p) // QUANT * QUANT, cap))
    # At least two grid steps so the "parallel" axis can shard across v7x's 2 TCs.
    return min(trows_max, _round_up(pl.cdiv(rows, 2), QUANT))


def irm_forward(x, params, env=None, *, tb_max=8192, lane_width=128):
    """Pallas TPU implementation of IRMmodel.forward(x, env) -> (y_pred, rep).

    lane_width: packing target for the hidden width (128 default; 256 can help
    on v6e/v7x's 2x256x256 MXUs if the kernel ever becomes compute-bound).
    """
    del env  # unused in the reference forward pass
    w1, b1, w2, b2, wp, bp = params
    batch, x_dim = x.shape
    h_dim = w1.shape[1]
    out_dtype = x.dtype

    # Lane-packing factor: pack p batch rows into one row of width p*h_dim.
    p = lane_width // h_dim if (h_dim <= lane_width and lane_width % h_dim == 0) else 1

    # Only pad for the packing reshape (<= p-1 rows).  Tiling never pads: the
    # grid uses pl.cdiv and Pallas masks the partial edge tile.
    batch_p = _round_up(batch, p)
    if batch_p != batch:
        x = jnp.pad(x, ((0, batch_p - batch), (0, 0)))   # tiny, only if batch % p != 0

    rows = batch_p // p
    kx, kh = p * x_dim, p * h_dim
    xk = x.reshape(rows, kx)                             # contiguous metadata reshape

    if p > 1:
        eye = jnp.eye(p, dtype=w1.dtype)
        w1k = jnp.kron(eye, w1)                          # (p*x_dim, p*h_dim) block-diag
        w2k = jnp.kron(eye, w2)                          # (p*h_dim, p*h_dim)
        b1k = jnp.tile(b1, (1, p))                       # (1, p*h_dim)
        b2k = jnp.tile(b2, (1, p))
        wpt = jnp.kron(eye, wp.reshape(1, h_dim))        # (p, p*h_dim) transposed head
    else:
        w1k, w2k, b1k, b2k = w1, w2, b1, b2
        wpt = wp.reshape(1, h_dim)

    trows = _choose_tile(rows, p, kx, kh, tb_max)
    grid = (pl.cdiv(rows, trows),)                       # masked partial edge tile if needed

    const2 = lambda i: (0, 0)
    flops = 2 * rows * (kx * kh + kh * kh + kh * p) + 2 * rows * kh
    bytes_accessed = 4 * (rows * (kx + kh + p)
                          + kx * kh + kh * kh + 2 * kh + p * kh + 1)

    y_t, rep = pl.pallas_call(
        _irm_kernel,
        out_shape=(
            jax.ShapeDtypeStruct((p, rows), out_dtype),      # y, transposed / lane-dense
            jax.ShapeDtypeStruct((rows, kh), out_dtype),     # rep, lane-dense
        ),
        grid=grid,
        in_specs=[
            pl.BlockSpec((trows, kx), lambda i: (i, 0)),     # x: tiled over batch
            pl.BlockSpec(w1k.shape, const2),                 # weights/biases stay resident
            pl.BlockSpec(b1k.shape, const2),
            pl.BlockSpec(w2k.shape, const2),
            pl.BlockSpec(b2k.shape, const2),
            pl.BlockSpec(wpt.shape, const2),
            pl.BlockSpec(bp.shape, const2),
        ],
        out_specs=(
            pl.BlockSpec((p, trows), lambda i: (0, i)),      # y_t: lane-dense writeback
            pl.BlockSpec((trows, kh), lambda i: (i, 0)),
        ),
        compiler_params=pltpu.CompilerParams(
            dimension_semantics=("parallel",),               # megacore-shardable on v7x
            vmem_limit_bytes=32 * 1024 * 1024,               # lift v5e's 16 MiB scoped default
        ),
        cost_estimate=pl.CostEstimate(
            flops=flops, transcendentals=0, bytes_accessed=bytes_accessed),
    )(xk, w1k, b1k, w2k, b2k, wpt, bp)

    # Undo lane packing (contiguous reshapes; y transpose is tiny: batch*4 bytes).
    rep = rep.reshape(batch_p, h_dim)[:batch]
    y_pred = y_t.T.reshape(batch_p, 1)[:batch]
    return y_pred, rep


def init_params(key, x_dim, h_dim):
    """Deterministic synthetic parameters (PyTorch Linear shapes, pre-transposed)."""
    k1, k2, k3, k4, k5, k6 = jax.random.split(key, 6)
    # nn.Linear(x_dim, h_dim): weight (h_dim, x_dim) -> stored transposed (x_dim, h_dim)
    w1 = jax.random.normal(k1, (x_dim, h_dim), jnp.float32) * 0.1
    b1 = jax.random.normal(k2, (1, h_dim), jnp.float32) * 0.1
    # nn.Linear(h_dim, h_dim)
    w2 = jax.random.normal(k3, (h_dim, h_dim), jnp.float32) * 0.1
    b2 = jax.random.normal(k4, (1, h_dim), jnp.float32) * 0.1
    # nn.Linear(h_dim, 1)
    wp = jax.random.normal(k5, (h_dim, 1), jnp.float32) * 0.1
    bp = jax.random.normal(k6, (1, 1), jnp.float32) * 0.1
    return (w1, b1, w2, b2, wp, bp)


def irm_forward_ref(x, params):
    """Pure-JAX reference for correctness checking."""
    w1, b1, w2, b2, wp, bp = params
    h1 = jnp.maximum(x @ w1 + b1, 0.0)
    h2 = jnp.maximum(h1 @ w2 + b2, 0.0)
    return h2 @ wp + bp, h2


if __name__ == "__main__":
    key = jax.random.PRNGKey(0)
    batch, x_dim, h_dim = 8, 16, 32

    kx_, kp_, ke_ = jax.random.split(key, 3)
    x = jax.random.normal(kx_, (batch, x_dim), jnp.float32)
    env = jax.random.randint(ke_, (batch,), 0, 2)   # unused by forward, kept for parity
    params = init_params(kp_, x_dim, h_dim)

    y_pred, rep = irm_forward(x, params, env)
    jax.block_until_ready((y_pred, rep))

    y_ref, rep_ref = irm_forward_ref(x, params)
    assert y_pred.shape == (batch, 1) and rep.shape == (batch, h_dim)
    assert jnp.allclose(y_pred, y_ref, atol=1e-5, rtol=1e-5)
    assert jnp.allclose(rep, rep_ref, atol=1e-5, rtol=1e-5)

    # Second config: non-p-aligned, multi-tile batch -> exercises the >=2-step
    # "parallel" grid (v7x megacore path) and the masked partial edge tile.
    batch2 = 1042
    x2 = jax.random.normal(jax.random.PRNGKey(1), (batch2, x_dim), jnp.float32)
    y2, rep2 = irm_forward(x2, params)
    jax.block_until_ready((y2, rep2))
    y2_ref, rep2_ref = irm_forward_ref(x2, params)
    assert y2.shape == (batch2, 1) and rep2.shape == (batch2, h_dim)
    assert jnp.allclose(y2, y2_ref, atol=1e-5, rtol=1e-5)
    assert jnp.allclose(rep2, rep2_ref, atol=1e-5, rtol=1e-5)

    print("KERNEL_OK")
</pallas_src>

<mosaic_0001>
module attributes {stable_mosaic.version = 11 : i64} {
  func.func @_irm_kernel(%arg0: i32, %arg1: memref<2x64xf32, #tpu.memory_space<vmem>>, %arg2: memref<64x128xf32, #tpu.memory_space<vmem>>, %arg3: memref<1x128xf32, #tpu.memory_space<vmem>>, %arg4: memref<128x128xf32, #tpu.memory_space<vmem>>, %arg5: memref<1x128xf32, #tpu.memory_space<vmem>>, %arg6: memref<4x128xf32, #tpu.memory_space<vmem>>, %arg7: memref<1x1xf32, #tpu.memory_space<vmem>>, %arg8: memref<4x2xf32, #tpu.memory_space<vmem>>, %arg9: memref<2x128xf32, #tpu.memory_space<vmem>>) attributes {dimension_semantics = [#tpu.dimension_semantics<parallel>], iteration_bounds = array<i64: 1>, scalar_prefetch = 0 : i64, scratch_operands = 0 : i64, tpu.core_type = #tpu.core_type<tc>, window_params = [{transform_indices = @transform_0, window_bounds = array<i64: 2, 64>}, {pipeline_mode = #tpu.pipeline_mode<synchronous>, transform_indices = @transform_1, window_bounds = array<i64: 64, 128>}, {pipeline_mode = #tpu.pipeline_mode<synchronous>, transform_indices = @transform_2, window_bounds = array<i64: 1, 128>}, {pipeline_mode = #tpu.pipeline_mode<synchronous>, transform_indices = @transform_3, window_bounds = array<i64: 128, 128>}, {pipeline_mode = #tpu.pipeline_mode<synchronous>, transform_indices = @transform_4, window_bounds = array<i64: 1, 128>}, {pipeline_mode = #tpu.pipeline_mode<synchronous>, transform_indices = @transform_5, window_bounds = array<i64: 4, 128>}, {pipeline_mode = #tpu.pipeline_mode<synchronous>, transform_indices = @transform_6, window_bounds = array<i64: 1, 1>}, {transform_indices = @transform_7, window_bounds = array<i64: 4, 2>}, {transform_indices = @transform_8, window_bounds = array<i64: 2, 128>}]} {
    %c0 = arith.constant 0 : index
    %c0_0 = arith.constant 0 : index
    %0 = vector.load %arg1[%c0, %c0_0] : memref<2x64xf32, #tpu.memory_space<vmem>>, vector<2x64xf32>
    %c0_1 = arith.constant 0 : index
    %c0_2 = arith.constant 0 : index
    %1 = vector.load %arg2[%c0_1, %c0_2] : memref<64x128xf32, #tpu.memory_space<vmem>>, vector<64x128xf32>
    %cst = arith.constant dense<0.000000e+00> : vector<2x128xf32>
    %2 = tpu.matmul %0, %1, %cst {dimension_numbers = #tpu.dot_dimension_numbers<[1], [0], [0], [1], [0, 0, 1, 1], [], []>} : vector<2x64xf32>, vector<64x128xf32>, vector<2x128xf32> -> vector<2x128xf32>
    %c0_3 = arith.constant 0 : index
    %c0_4 = arith.constant 0 : index
    %3 = vector.load %arg3[%c0_3, %c0_4] : memref<1x128xf32, #tpu.memory_space<vmem>>, vector<1x128xf32>
    %4 = vector.broadcast %3 : vector<1x128xf32> to vector<2x128xf32>
    %5 = arith.addf %2, %4 : vector<2x128xf32>
    %cst_5 = arith.constant 0.000000e+00 : f32
    %6 = vector.broadcast %cst_5 : f32 to vector<2x128xf32>
    %7 = arith.maximumf %5, %6 : vector<2x128xf32>
    %c0_6 = arith.constant 0 : index
    %c0_7 = arith.constant 0 : index
    %8 = vector.load %arg4[%c0_6, %c0_7] : memref<128x128xf32, #tpu.memory_space<vmem>>, vector<128x128xf32>
    %cst_8 = arith.constant dense<0.000000e+00> : vector<2x128xf32>
    %9 = tpu.matmul %7, %8, %cst_8 {dimension_numbers = #tpu.dot_dimension_numbers<[1], [0], [0], [1], [0, 0, 1, 1], [], []>} : vector<2x128xf32>, vector<128x128xf32>, vector<2x128xf32> -> vector<2x128xf32>
    %c0_9 = arith.constant 0 : index
    %c0_10 = arith.constant 0 : index
    %10 = vector.load %arg5[%c0_9, %c0_10] : memref<1x128xf32, #tpu.memory_space<vmem>>, vector<1x128xf32>
    %11 = vector.broadcast %10 : vector<1x128xf32> to vector<2x128xf32>
    %12 = arith.addf %9, %11 : vector<2x128xf32>
    %cst_11 = arith.constant 0.000000e+00 : f32
    %13 = vector.broadcast %cst_11 : f32 to vector<2x128xf32>
    %14 = arith.maximumf %12, %13 : vector<2x128xf32>
    %c0_12 = arith.constant 0 : index
    %c0_13 = arith.constant 0 : index
    %15 = vector.load %arg9[%c0_12, %c0_13] : memref<2x128xf32, #tpu.memory_space<vmem>>, vector<2x128xf32>
    tpu.vector_store %arg9[%c0_12, %c0_13], %14 {strides = array<i32>} : memref<2x128xf32, #tpu.memory_space<vmem>>, vector<2x128xf32>,
    %c0_14 = arith.constant 0 : index
    %c0_15 = arith.constant 0 : index
    %16 = vector.load %arg6[%c0_14, %c0_15] : memref<4x128xf32, #tpu.memory_space<vmem>>, vector<4x128xf32>
    %cst_16 = arith.constant dense<0.000000e+00> : vector<4x2xf32>
    %17 = tpu.matmul %16, %14, %cst_16 {dimension_numbers = #tpu.dot_dimension_numbers<[1], [1], [0], [0], [0, 0, 1, 0], [], []>} : vector<4x128xf32>, vector<2x128xf32>, vector<4x2xf32> -> vector<4x2xf32>
    %c0_17 = arith.constant 0 : index
    %c0_18 = arith.constant 0 : index
    %18 = vector.load %arg7[%c0_17, %c0_18] : memref<1x1xf32, #tpu.memory_space<vmem>>, vector<1x1xf32>
    %19 = vector.broadcast %18 : vector<1x1xf32> to vector<4x2xf32>
    %20 = arith.addf %17, %19 : vector<4x2xf32>
    %c0_19 = arith.constant 0 : index
    %c0_20 = arith.constant 0 : index
    %21 = vector.load %arg8[%c0_19, %c0_20] : memref<4x2xf32, #tpu.memory_space<vmem>>, vector<4x2xf32>
    tpu.vector_store %arg8[%c0_19, %c0_20], %20 {strides = array<i32>} : memref<4x2xf32, #tpu.memory_space<vmem>>, vector<4x2xf32>,
    return
  }
  func.func @transform_0(%arg0: i32) -> (i32, i32) {
    %c0_i32 = arith.constant 0 : i32
    %c0_i32_0 = arith.constant 0 : i32
    return %arg0, %c0_i32 : i32, i32
  }
  func.func @transform_1(%arg0: i32) -> (i32, i32) {
    %c0_i32 = arith.constant 0 : i32
    %c0_i32_0 = arith.constant 0 : i32
    %c0_i32_1 = arith.constant 0 : i32
    return %c0_i32, %c0_i32_0 : i32, i32
  }
  func.func @transform_2(%arg0: i32) -> (i32, i32) {
    %c0_i32 = arith.constant 0 : i32
    %c0_i32_0 = arith.constant 0 : i32
    %c0_i32_1 = arith.constant 0 : i32
    return %c0_i32, %c0_i32_0 : i32, i32
  }
  func.func @transform_3(%arg0: i32) -> (i32, i32) {
    %c0_i32 = arith.constant 0 : i32
    %c0_i32_0 = arith.constant 0 : i32
    %c0_i32_1 = arith.constant 0 : i32
    return %c0_i32, %c0_i32_0 : i32, i32
  }
  func.func @transform_4(%arg0: i32) -> (i32, i32) {
    %c0_i32 = arith.constant 0 : i32
    %c0_i32_0 = arith.constant 0 : i32
    %c0_i32_1 = arith.constant 0 : i32
    return %c0_i32, %c0_i32_0 : i32, i32
  }
  func.func @transform_5(%arg0: i32) -> (i32, i32) {
    %c0_i32 = arith.constant 0 : i32
    %c0_i32_0 = arith.constant 0 : i32
    %c0_i32_1 = arith.constant 0 : i32
    return %c0_i32, %c0_i32_0 : i32, i32
  }
  func.func @transform_6(%arg0: i32) -> (i32, i32) {
    %c0_i32 = arith.constant 0 : i32
    %c0_i32_0 = arith.constant 0 : i32
    %c0_i32_1 = arith.constant 0 : i32
    return %c0_i32, %c0_i32_0 : i32, i32
  }
  func.func @transform_7(%arg0: i32) -> (i32, i32) {
    %c0_i32 = arith.constant 0 : i32
    %c0_i32_0 = arith.constant 0 : i32
    return %c0_i32, %arg0 : i32, i32
  }
  func.func @transform_8(%arg0: i32) -> (i32, i32) {
    %c0_i32 = arith.constant 0 : i32
    %c0_i32_0 = arith.constant 0 : i32
    return %arg0, %c0_i32 : i32, i32
  }
}

</mosaic_0001>

<llo_original>
// kernel: tpu_custom_call.1
$region0: #{tpu_custom_call.1}
  #allocation0 [shape = 'u32[]', space=smem, size = 0x4, offset = 0x4, fixed_abs, tag = 'smem constant byte address 0x4 - core index']
  #allocation1 [shape = 'u32[144,128]{1,0:T(1,128)}', space=vmem, size = 0x12000, scoped, tag = 'internal scratch']
  #allocation2 [shape = 'f32[1,1]{1,0:T(1,128)S(1)}', space=vmem, size = 0x200, scoped, tag = 'scoped memory for tpu_custom_call.1']
  %s0 = inlined_call_operand.vmem [shape: f32[2,64], index: 0, kind: input, shape index: {}]
  %s1 = inlined_call_operand.hbm [shape: f32[64,128], index: 1, kind: input, shape index: {}]
  %s2 = inlined_call_operand.vmem [shape: f32[1,128], index: 2, kind: input, shape index: {}]
  %s3 = inlined_call_operand.hbm [shape: f32[128,128], index: 3, kind: input, shape index: {}]
  %s4 = inlined_call_operand.vmem [shape: f32[1,128], index: 4, kind: input, shape index: {}]
  %s5 = inlined_call_operand.vmem [shape: f32[4,128], index: 5, kind: input, shape index: {}]
  %s6 = inlined_call_operand.<no memory space> [shape: f32[1,1], index: 6, kind: input, shape index: {}]
  %s7 = inlined_call_operand.vmem [shape: f32[4,2], index: 7, kind: output, shape index: {0}]
  %s8 = inlined_call_operand.hbm [shape: f32[2,128], index: 8, kind: output, shape index: {1}]
  %9 = xla_tuple %s7, %s8
  %s10 = sld [smem:[#allocation0]]
  $region54: #{tpu_custom_call.1} parent=0
    _
  %s12 = ssub.s32 1, %s10
  %s13 = scalar_select 0, %s12, %s10
  %v14 = vstv %s6
  %15 = vst [vmem:[#allocation2] sm:$0x1] %v14
  $region1: #{tpu_custom_call.1} parent=0
    #allocation3 [shape = 'u8[32768]{0}', space=vmem, size = 0x8000, scoped, tag = 'input window, operand 1, single buffered']
    #allocation4 [shape = 's32[1]{0}', space=sflag, size = 0x4, scoped, tag = 'scoped memory for tpu_custom_call.1']
    #allocation5 [shape = 's32[1]{0}', space=sflag, size = 0x4, scoped, tag = 'scoped memory for tpu_custom_call.1']
    #allocation6 [shape = 'u8[65536]{0}', space=vmem, size = 0x10000, scoped, tag = 'input window, operand 3, single buffered']
    #allocation7 [shape = 's32[1]{0}', space=sflag, size = 0x4, scoped, tag = 'scoped memory for tpu_custom_call.1']
    #allocation8 [shape = 'u8[1024]{0}', space=vmem, size = 0x400, scoped, tag = 'output window, operand 1, single buffered']
    %16 = vsyncpa [#allocation4], 0
    %17 = vsyncpa [#allocation7], 0
    %18 = vsyncpa [#allocation5], 0
    // Predicated region
    $region2: #{tpu_custom_call.1} parent=1 // pred_check
      _
    $region3: #{tpu_custom_call.1} parent=1 // pred_check_branch
      %20 = sbr.rel (0) target = $region5
    $region4: #{tpu_custom_call.1} parent=1 // pred_region
      _
    $region5: #{tpu_custom_call.1} parent=1 // pred_fallthru
      _
    // Predicated region
    $region6: #{tpu_custom_call.1} parent=1 // pred_check
      _
    $region7: #{tpu_custom_call.1} parent=1 // pred_check_branch
      %22 = sbr.rel (0) target = $region9
    $region8: #{tpu_custom_call.1} parent=1 // pred_region
      %s24 = ssub.s32 1024, 1024
      %25 = vsyncadd [#allocation4], %s24
      %s26 = sshll.u32 [#allocation3], 4
      %s27 = int_to_ptr.vmem [resolvable:$true] %s26
      %32 = dma.hbm_to_vmem [thread:$0]  %s1, 1024, %s27, [#allocation4], 128, 128, 8
    $region9: #{tpu_custom_call.1} parent=1 // pred_fallthru
      _
    // Predicated region
    $region10: #{tpu_custom_call.1} parent=1 // pred_check
      _
    $region11: #{tpu_custom_call.1} parent=1 // pred_check_branch
      %34 = sbr.rel (0) target = $region13
    $region12: #{tpu_custom_call.1} parent=1 // pred_region
      _
    $region13: #{tpu_custom_call.1} parent=1 // pred_fallthru
      _
    // Predicated region
    $region14: #{tpu_custom_call.1} parent=1 // pred_check
      _
    $region15: #{tpu_custom_call.1} parent=1 // pred_check_branch
      %36 = sbr.rel (0) target = $region17
    $region16: #{tpu_custom_call.1} parent=1 // pred_region
      %s38 = ssub.s32 2048, 2048
      %39 = vsyncadd [#allocation7], %s38
      %s40 = sshll.u32 [#allocation6], 4
      %s41 = int_to_ptr.vmem [resolvable:$true] %s40
      %46 = dma.hbm_to_vmem [thread:$0]  %s3, 2048, %s41, [#allocation7], 128, 128, 8
    $region17: #{tpu_custom_call.1} parent=1 // pred_fallthru
      _
    // Predicated region
    $region18: #{tpu_custom_call.1} parent=1 // pred_check
      _
    $region19: #{tpu_custom_call.1} parent=1 // pred_check_branch
      %48 = sbr.rel (0) target = $region21
    $region20: #{tpu_custom_call.1} parent=1 // pred_region
      _
    $region21: #{tpu_custom_call.1} parent=1 // pred_fallthru
      _
    // Predicated region
    $region22: #{tpu_custom_call.1} parent=1 // pred_check
      _
    $region23: #{tpu_custom_call.1} parent=1 // pred_check_branch
      %50 = sbr.rel (0) target = $region25
    $region24: #{tpu_custom_call.1} parent=1 // pred_region
      _
    $region25: #{tpu_custom_call.1} parent=1 // pred_fallthru
      _
    // Predicated region
    $region26: #{tpu_custom_call.1} parent=1 // pred_check
      _
    $region27: #{tpu_custom_call.1} parent=1 // pred_check_branch
      %52 = sbr.rel (0) target = $region29
    $region28: #{tpu_custom_call.1} parent=1 // pred_region
      _
    $region29: #{tpu_custom_call.1} parent=1 // pred_fallthru
      _
    // Predicated region
    $region30: #{tpu_custom_call.1} parent=1 // pred_check
      _
    $region31: #{tpu_custom_call.1} parent=1 // pred_check_branch
      %54 = sbr.rel (0) target = $region33
    $region32: #{tpu_custom_call.1} parent=1 // pred_region
      %55 = dma.done [#allocation4], 1024
    $region33: #{tpu_custom_call.1} parent=1 // pred_fallthru
      _
    // Predicated region
    $region34: #{tpu_custom_call.1} parent=1 // pred_check
      _
    $region35: #{tpu_custom_call.1} parent=1 // pred_check_branch
      %57 = sbr.rel (0) target = $region37
    $region36: #{tpu_custom_call.1} parent=1 // pred_region
      %58 = dma.done [#allocation7], 2048
    $region37: #{tpu_custom_call.1} parent=1 // pred_fallthru
      _
    %v59 = vld [vmem:[%s0] sm:$0x3]
    %v60 = vld [vmem:[#allocation3] sm:$0xff]
    %v61 = vld [vmem:[#allocation3 + $0x8] sm:$0xff]
    %v62 = vld [vmem:[#allocation3 + $0x10] sm:$0xff]
    %v63 = vld [vmem:[#allocation3 + $0x18] sm:$0xff]
    %v64 = vld [vmem:[#allocation3 + $0x20] sm:$0xff]
    %v65 = vld [vmem:[#allocation3 + $0x28] sm:$0xff]
    %v66 = vld [vmem:[#allocation3 + $0x30] sm:$0xff]
    %v67 = vld [vmem:[#allocation3 + $0x38] sm:$0xff]
    %v68 = vld [vmem:[%s2] sm:$0x1]
    %v70 = vlaneseq
    %v71 = vshrl.u32 %v70, 7
    %v72 = vsub.s32 0, %v71
    %v73 = vrot.slane %v68, %v72
    %vm75 = vcmask 523264
    %v77 = vsel %vm75, %v59, 0
    %79 = vmatprep.subr.mxu0 0.0
    %80 = vmatpush1.msra.mxu0 %v60
    %81 = vmatprep.subr.mxu0 0.0
    %82 = vmatpush1.msra.mxu0 %v61
    %83 = vmatprep.subr.mxu0 0.0
    %84 = vmatpush1.msra.mxu0 %v62
    %85 = vmatprep.subr.mxu0 0.0
    %86 = vmatpush1.msra.mxu0 %v63
    %87 = vmatprep.subr.mxu0 0.0
    %88 = vmatpush1.msra.mxu0 %v64
    %89 = vmatprep.subr.mxu0 0.0
    %90 = vmatpush1.msra.mxu0 %v65
    %91 = vmatprep.subr.mxu0 0.0
    %92 = vmatpush1.msra.mxu0 %v66
    %93 = vmatprep.subr.mxu0 0.0
    %94 = vmatpush1.msra.mxu0 %v67
    %95 = vmatprep.subr.mxu0 0.0
    %96 = vmatpush1.msra.mxu0 0.0
    %97 = vmatprep.subr.mxu0 0.0
    %98 = vmatpush1.msra.mxu0 0.0
    %99 = vmatprep.subr.mxu0 0.0
    %100 = vmatpush1.msra.mxu0 0.0
    %101 = vmatprep.subr.mxu0 0.0
    %102 = vmatpush1.msra.mxu0 0.0
    %103 = vmatprep.subr.mxu0 0.0
    %104 = vmatpush1.msra.mxu0 0.0
    %105 = vmatprep.subr.mxu0 0.0
    %106 = vmatpush1.msra.mxu0 0.0
    %107 = vmatprep.subr.mxu0 0.0
    %108 = vmatpush1.msra.mxu0 0.0
    %109 = vmatprep.subr.mxu0 0.0
    %110 = vmatpush1.msra.mxu0 0.0
    %111 = vmatprep.subr.mxu0 0.0
    %112 = vmatpush1.msra.mxu0 0.0
    %113 = vmatprep.subr.mxu0 0.0
    %114 = vmatpush1.msra.mxu0 0.0
    %115 = vmatprep.subr.mxu0 0.0
    %116 = vmatpush1.msra.mxu0 0.0
    %117 = vmatprep.subr.mxu0 0.0
    %118 = vmatpush1.msra.mxu0 0.0
    %119 = vmatprep.subr.mxu0 0.0
    %120 = vmatpush1.msra.mxu0 0.0
    %121 = vmatprep.subr.mxu0 0.0
    %122 = vmatpush1.msra.mxu0 0.0
    %123 = vmatprep.subr.mxu0 0.0
    %124 = vmatpush1.msra.mxu0 0.0
    %125 = vmatprep.subr.mxu0 0.0
    %126 = vmatpush1.msra.mxu0 0.0
    %127 = vmatprep.subr.mxu0 0.0
    %128 = vmatpush1.msra.mxu0 0.0
    %129 = vmatprep.subr.mxu0 0.0
    %130 = vmatpush1.msra.mxu0 0.0
    %131 = vmatprep.subr.mxu0 0.0
    %132 = vmatpush1.msra.mxu0 0.0
    %133 = vmatprep.subr.mxu0 0.0
    %134 = vmatpush1.msra.mxu0 0.0
    %135 = vmatprep.subr.mxu0 0.0
    %136 = vmatpush1.msra.mxu0 0.0
    %137 = vmatprep.subr.mxu0 0.0
    %138 = vmatpush1.msra.mxu0 0.0
    %139 = vmatprep.subr.mxu0 0.0
    %140 = vmatpush1.msra.mxu0 0.0
    %141 = vmatprep.subr.mxu0 0.0
    %142 = vmatpush1.msra.mxu0 0.0
    %143 = vmatprep.mubr.f32.mxu0 0.0
    %144 = vmatmul.mubr.f32.gmra.mrb[0].mxu0 %v77
    %v145 = vpop.f32.mrb[0].mxu0
    %v146 = vadd.f32 %v73, %v145
    %v147 = vpop.f32.mrb[0].mxu0
    %148 = vdwg.mxu0
    %v149 = vmax.f32 %v146, 0.0
    %v150 = vld [vmem:[#allocation6] sm:$0xff]
    %v151 = vld [vmem:[#allocation6 + $0x8] sm:$0xff]
    %v152 = vld [vmem:[#allocation6 + $0x10] sm:$0xff]
    %v153 = vld [vmem:[#allocation6 + $0x18] sm:$0xff]
    %v154 = vld [vmem:[#allocation6 + $0x20] sm:$0xff]
    %v155 = vld [vmem:[#allocation6 + $0x28] sm:$0xff]
    %v156 = vld [vmem:[#allocation6 + $0x30] sm:$0xff]
    %v157 = vld [vmem:[#allocation6 + $0x38] sm:$0xff]
    %v158 = vld [vmem:[#allocation6 + $0x40] sm:$0xff]
    %v159 = vld [vmem:[#allocation6 + $0x48] sm:$0xff]
    %v160 = vld [vmem:[#allocation6 + $0x50] sm:$0xff]
    %v161 = vld [vmem:[#allocation6 + $0x58] sm:$0xff]
    %v162 = vld [vmem:[#allocation6 + $0x60] sm:$0xff]
    %v163 = vld [vmem:[#allocation6 + $0x68] sm:$0xff]
    %v164 = vld [vmem:[#allocation6 + $0x70] sm:$0xff]
    %v165 = vld [vmem:[#allocation6 + $0x78] sm:$0xff]
    %v166 = vld [vmem:[%s4] sm:$0x1]
    %v168 = vlaneseq
    %v169 = vshrl.u32 %v168, 7
    %v170 = vsub.s32 0, %v169
    %v171 = vrot.slane %v166, %v170
    %173 = vmatprep.subr.mxu0 0.0
    %174 = vmatpush1.msra.mxu0 %v150
    %175 = vmatprep.subr.mxu0 0.0
    %176 = vmatpush1.msra.mxu0 %v151
    %177 = vmatprep.subr.mxu0 0.0
    %178 = vmatpush1.msra.mxu0 %v152
    %179 = vmatprep.subr.mxu0 0.0
    %180 = vmatpush1.msra.mxu0 %v153
    %181 = vmatprep.subr.mxu0 0.0
    %182 = vmatpush1.msra.mxu0 %v154
    %183 = vmatprep.subr.mxu0 0.0
    %184 = vmatpush1.msra.mxu0 %v155
    %185 = vmatprep.subr.mxu0 0.0
    %186 = vmatpush1.msra.mxu0 %v156
    %187 = vmatprep.subr.mxu0 0.0
    %188 = vmatpush1.msra.mxu0 %v157
    %189 = vmatprep.subr.mxu0 0.0
    %190 = vmatpush1.msra.mxu0 %v158
    %191 = vmatprep.subr.mxu0 0.0
    %192 = vmatpush1.msra.mxu0 %v159
    %193 = vmatprep.subr.mxu0 0.0
    %194 = vmatpush1.msra.mxu0 %v160
    %195 = vmatprep.subr.mxu0 0.0
    %196 = vmatpush1.msra.mxu0 %v161
    %197 = vmatprep.subr.mxu0 0.0
    %198 = vmatpush1.msra.mxu0 %v162
    %199 = vmatprep.subr.mxu0 0.0
    %200 = vmatpush1.msra.mxu0 %v163
    %201 = vmatprep.subr.mxu0 0.0
    %202 = vmatpush1.msra.mxu0 %v164
    %203 = vmatprep.subr.mxu0 0.0
    %204 = vmatpush1.msra.mxu0 %v165
    %205 = vmatprep.subr.mxu0 0.0
    %206 = vmatpush1.msra.mxu0 0.0
    %207 = vmatprep.subr.mxu0 0.0
    %208 = vmatpush1.msra.mxu0 0.0
    %209 = vmatprep.subr.mxu0 0.0
    %210 = vmatpush1.msra.mxu0 0.0
    %211 = vmatprep.subr.mxu0 0.0
    %212 = vmatpush1.msra.mxu0 0.0
    %213 = vmatprep.subr.mxu0 0.0
    %214 = vmatpush1.msra.mxu0 0.0
    %215 = vmatprep.subr.mxu0 0.0
    %216 = vmatpush1.msra.mxu0 0.0
    %217 = vmatprep.subr.mxu0 0.0
    %218 = vmatpush1.msra.mxu0 0.0
    %219 = vmatprep.subr.mxu0 0.0
    %220 = vmatpush1.msra.mxu0 0.0
    %221 = vmatprep.subr.mxu0 0.0
    %222 = vmatpush1.msra.mxu0 0.0
    %223 = vmatprep.subr.mxu0 0.0
    %224 = vmatpush1.msra.mxu0 0.0
    %225 = vmatprep.subr.mxu0 0.0
    %226 = vmatpush1.msra.mxu0 0.0
    %227 = vmatprep.subr.mxu0 0.0
    %228 = vmatpush1.msra.mxu0 0.0
    %229 = vmatprep.subr.mxu0 0.0
    %230 = vmatpush1.msra.mxu0 0.0
    %231 = vmatprep.subr.mxu0 0.0
    %232 = vmatpush1.msra.mxu0 0.0
    %233 = vmatprep.subr.mxu0 0.0
    %234 = vmatpush1.msra.mxu0 0.0
    %235 = vmatprep.subr.mxu0 0.0
    %236 = vmatpush1.msra.mxu0 0.0
    %237 = vmatprep.mubr.f32.mxu0 0.0
    %238 = vmatmul.mubr.f32.gmra.mrb[0].mxu0 %v149
    %v239 = vpop.f32.mrb[0].mxu0
    %v240 = vadd.f32 %v171, %v239
    %v241 = vpop.f32.mrb[0].mxu0
    %242 = vdwg.mxu0
    %v243 = vmax.f32 %v240, 0.0
    %244 = vst [vmem:[#allocation8] sm:$0x3] %v243
    %v245 = vld [vmem:[%s5] sm:$0xf]
    %v246 = vld [vmem:[#allocation2] sm:$0x1]
    %v248 = vlaneseq
    %v249 = vshrl.u32 %v248, 7
    %v250 = vsub.s32 0, %v249
    %v251 = vrot.slane %v246, %v250
    %252 = vset.pattern.permute.xlu0 0
    %253 = vperm.xlu0 %252, %v251
    %v254 = vpop.permute.xlu0 %253
    %256 = vmatprep.subr.mxu0 0.0
    %257 = vmatpush1.xpose.msra.mxu0 %v243
    %258 = vmatprep.subr.mxu0 0.0
    %259 = vmatpush1.xpose.msra.mxu0 0.0
    %260 = vmatprep.subr.mxu0 0.0
    %261 = vmatpush1.xpose.msra.mxu0 0.0
    %262 = vmatprep.subr.mxu0 0.0
    %263 = vmatpush1.xpose.msra.mxu0 0.0
    %264 = vmatprep.subr.mxu0 0.0
    %265 = vmatpush1.xpose.msra.mxu0 0.0
    %266 = vmatprep.subr.mxu0 0.0
    %267 = vmatpush1.xpose.msra.mxu0 0.0
    %268 = vmatprep.subr.mxu0 0.0
    %269 = vmatpush1.xpose.msra.mxu0 0.0
    %270 = vmatprep.subr.mxu0 0.0
    %271 = vmatpush1.xpose.msra.mxu0 0.0
    %272 = vmatprep.subr.mxu0 0.0
    %273 = vmatpush1.xpose.msra.mxu0 0.0
    %274 = vmatprep.subr.mxu0 0.0
    %275 = vmatpush1.xpose.msra.mxu0 0.0
    %276 = vmatprep.subr.mxu0 0.0
    %277 = vmatpush1.xpose.msra.mxu0 0.0
    %278 = vmatprep.subr.mxu0 0.0
    %279 = vmatpush1.xpose.msra.mxu0 0.0
    %280 = vmatprep.subr.mxu0 0.0
    %281 = vmatpush1.xpose.msra.mxu0 0.0
    %282 = vmatprep.subr.mxu0 0.0
    %283 = vmatpush1.xpose.msra.mxu0 0.0
    %284 = vmatprep.subr.mxu0 0.0
    %285 = vmatpush1.xpose.msra.mxu0 0.0
    %286 = vmatprep.subr.mxu0 0.0
    %287 = vmatpush1.xpose.msra.mxu0 0.0
    %288 = vmatprep.subr.mxu0 0.0
    %289 = vmatpush1.xpose.msra.mxu0 0.0
    %290 = vmatprep.subr.mxu0 0.0
    %291 = vmatpush1.xpose.msra.mxu0 0.0
    %292 = vmatprep.subr.mxu0 0.0
    %293 = vmatpush1.xpose.msra.mxu0 0.0
    %294 = vmatprep.subr.mxu0 0.0
    %295 = vmatpush1.xpose.msra.mxu0 0.0
    %296 = vmatprep.subr.mxu0 0.0
    %297 = vmatpush1.xpose.msra.mxu0 0.0
    %298 = vmatprep.subr.mxu0 0.0
    %299 = vmatpush1.xpose.msra.mxu0 0.0
    %300 = vmatprep.subr.mxu0 0.0
    %301 = vmatpush1.xpose.msra.mxu0 0.0
    %302 = vmatprep.subr.mxu0 0.0
    %303 = vmatpush1.xpose.msra.mxu0 0.0
    %304 = vmatprep.subr.mxu0 0.0
    %305 = vmatpush1.xpose.msra.mxu0 0.0
    %306 = vmatprep.subr.mxu0 0.0
    %307 = vmatpush1.xpose.msra.mxu0 0.0
    %308 = vmatprep.subr.mxu0 0.0
    %309 = vmatpush1.xpose.msra.mxu0 0.0
    %310 = vmatprep.subr.mxu0 0.0
    %311 = vmatpush1.xpose.msra.mxu0 0.0
    %312 = vmatprep.subr.mxu0 0.0
    %313 = vmatpush1.xpose.msra.mxu0 0.0
    %314 = vmatprep.subr.mxu0 0.0
    %315 = vmatpush1.xpose.msra.mxu0 0.0
    %316 = vmatprep.subr.mxu0 0.0
    %317 = vmatpush1.xpose.msra.mxu0 0.0
    %318 = vmatprep.subr.mxu0 0.0
    %319 = vmatpush1.xpose.msra.mxu0 0.0
    %320 = vmatprep.mubr.f32.mxu0 0.0
    %321 = vmatmul.mubr.f32.gmra.mrb[0].mxu0 %v245
    %v322 = vpop.f32.mrb[0].mxu0
    %v323 = vadd.f32 %v254, %v322
    %v324 = vpop.f32.mrb[0].mxu0
    %325 = vdwg.mxu0
    %vm326 = vcmask 11264
    %327 = vst.msk [vmem:[%s7] sm:$0xf] %vm326, %v323
    // Predicated region
    $region38: #{tpu_custom_call.1} parent=1 // pred_check
      _
    $region39: #{tpu_custom_call.1} parent=1 // pred_check_branch
      %329 = sbr.rel (0) target = $region41
    $region40: #{tpu_custom_call.1} parent=1 // pred_region
      _
    $region41: #{tpu_custom_call.1} parent=1 // pred_fallthru
      _
    // Predicated region
    $region42: #{tpu_custom_call.1} parent=1 // pred_check
      _
    $region43: #{tpu_custom_call.1} parent=1 // pred_check_branch
      %331 = sbr.rel (0) target = $region45
    $region44: #{tpu_custom_call.1} parent=1 // pred_region
      %s333 = ssub.s32 32, 32
      %334 = vsyncadd [#allocation5], %s333
      %s336 = sshll.u32 [#allocation8], 4
      %s337 = int_to_ptr.vmem [resolvable:$true] %s336
      %339 = dma.vmem_to_hbm [thread:$0]  %s337, 32, %s8, [#allocation5]
    $region45: #{tpu_custom_call.1} parent=1 // pred_fallthru
      _
    // Predicated region
    $region46: #{tpu_custom_call.1} parent=1 // pred_check
      _
    $region47: #{tpu_custom_call.1} parent=1 // pred_check_branch
      %341 = sbr.rel (0) target = $region49
    $region48: #{tpu_custom_call.1} parent=1 // pred_region
      _
    $region49: #{tpu_custom_call.1} parent=1 // pred_fallthru
      _
    // Predicated region
    $region50: #{tpu_custom_call.1} parent=1 // pred_check
      _
    $region51: #{tpu_custom_call.1} parent=1 // pred_check_branch
      %343 = sbr.rel (0) target = $region53
    $region52: #{tpu_custom_call.1} parent=1 // pred_region
      %344 = dma.done [#allocation5], 32
    $region53: #{tpu_custom_call.1} parent=1 // pred_fallthru
      _
    %345 = vsyncpa [#allocation4], 1
    %346 = vsyncpa [#allocation7], 1
    %347 = vsyncpa [#allocation5], 1

</llo_original>
